<compile_context>
chip_gen: v6e
topology: v6e:2x2x1
jax: 0.10.0
libtpu: 0.0.40
codegen_flags: <defaults>
</compile_context>

<pallas_src>
import jax
import jax.numpy as jnp
from jax.experimental import pallas as pl
from jax.experimental.pallas import tpu as pltpu


def resblock_ks1_kernel(x_ref, scale_ref, shift_ref, w1_ref, w2_ref, out_ref):
    # x_ref:     (BB, Cin, HWp)  BB batch elements, spatial flattened on lanes
    # scale_ref: (Cin, 1)        folded BN scale = gamma / sqrt(var + eps), f32
    # shift_ref: (Cin, 1)        folded BN shift = beta - mean * scale, f32
    # w1_ref:    (Cout, Cin)     conv1 1x1 weight (caller dtype)
    # w2_ref:    (Cout, Cout)    conv2 1x1 weight (caller dtype)
    # out_ref:   (BB, Cout, HWp)
    BB = x_ref.shape[0]
    scale = scale_ref[...]
    shift = shift_ref[...]
    w1 = w1_ref[...]
    w2 = w2_ref[...]

    def body(b, carry):
        x_in = x_ref[b]                                    # (Cin, HWp)
        xf = x_in.astype(jnp.float32)

        # bn1 (folded) + relu1 -- f32 VPU math (v5e has no bf16 VPU)
        t = jnp.maximum(xf * scale + shift, 0.0)

        # conv1 (1x1) == (Cout, Cin) @ (Cin, HWp); f32 accumulation on MXU
        y = jnp.dot(w1, t.astype(w1.dtype),
                    preferred_element_type=jnp.float32)

        # dropout (eval) = identity; relu2
        y = jnp.maximum(y, 0.0)

        # conv2 (1x1)
        y = jnp.dot(w2, y.astype(w2.dtype),
                    preferred_element_type=jnp.float32)

        # identity residual = raw input x
        out_ref[b] = (y + xf).astype(out_ref.dtype)
        return carry

    jax.lax.fori_loop(0, BB, body, None, unroll=True)


@jax.jit
def my_basic_res_block_ks1(x_nchw, bn_w, bn_b, bn_rm, bn_rv, w1_oihw, w2_oihw):
    eps = 1e-5
    N, Cin, H, W = x_nchw.shape
    Cout = w1_oihw.shape[0]
    assert Cout == Cin, "identity residual requires planes == inplanes"
    HW = H * W
    itemsize = jnp.dtype(x_nchw.dtype).itemsize

    # Lane-dense layout: pad the spatial (lane) dim up to a multiple of 128.
    HWp = pl.cdiv(HW, 128) * 128

    # Batch block: aim for ~2 MiB of in+out per grid step, but keep at least
    # 4 grid steps when N allows (>=2 pipelinable steps per v7x TensorCore).
    bytes_per_elem = 2 * Cin * HWp * itemsize
    target_bytes_per_step = 2 * 1024 * 1024
    BB = int(max(1, min(N, target_bytes_per_step // max(bytes_per_elem, 1))))
    while BB > 1 and pl.cdiv(N, BB) < 4:
        BB = max(1, BB // 2)
    steps = pl.cdiv(N, BB)
    Np = steps * BB

    # (N, C, H, W) -> (N, C, H*W): pure reshape of contiguous NCHW (no HBM
    # transpose).  Pad batch/lanes only when needed; sliced off at the end.
    x = x_nchw.reshape(N, Cin, HW)
    if (Np != N) or (HWp != HW):
        x = jnp.pad(x, ((0, Np - N), (0, 0), (0, HWp - HW)))

    # Fold BatchNorm (eval mode) into per-channel scale/shift, shaped (C, 1)
    # so they broadcast along the lane (spatial) axis inside the kernel.
    inv_std = 1.0 / jnp.sqrt(bn_rv.astype(jnp.float32) + eps)
    scale = (bn_w.astype(jnp.float32) * inv_std).reshape(Cin, 1)
    shift = (bn_b.astype(jnp.float32)
             - bn_rm.astype(jnp.float32) * bn_w.astype(jnp.float32) * inv_std
             ).reshape(Cin, 1)

    # 1x1 conv weights OIHW=(Cout, Cin, 1, 1) -> (Cout, Cin); keep caller
    # dtype (bf16 stays bf16 -> half the weight DMA, native bf16 MXU path).
    w1 = w1_oihw.reshape(Cout, Cin)
    w2 = w2_oihw.reshape(Cout, Cout)

    flops = 2 * N * HW * (Cout * Cin + Cout * Cout)
    bytes_accessed = (2 * N * Cin * HW * itemsize
                      + (w1.size + w2.size) * jnp.dtype(w1.dtype).itemsize
                      + 2 * Cin * 4)

    out = pl.pallas_call(
        resblock_ks1_kernel,
        out_shape=jax.ShapeDtypeStruct((Np, Cout, HWp), x_nchw.dtype),
        grid_spec=pltpu.PrefetchScalarGridSpec(
            num_scalar_prefetch=0,
            grid=(steps,),
            in_specs=[
                pl.BlockSpec((BB, Cin, HWp), lambda n: (n, 0, 0)),
                pl.BlockSpec((Cin, 1), lambda n: (0, 0)),
                pl.BlockSpec((Cin, 1), lambda n: (0, 0)),
                pl.BlockSpec((Cout, Cin), lambda n: (0, 0)),
                pl.BlockSpec((Cout, Cout), lambda n: (0, 0)),
            ],
            out_specs=pl.BlockSpec((BB, Cout, HWp), lambda n: (n, 0, 0)),
        ),
        compiler_params=pltpu.CompilerParams(
            dimension_semantics=("parallel",),
        ),
        input_output_aliases={0: 0},
        cost_estimate=pl.CostEstimate(
            flops=flops, transcendentals=0, bytes_accessed=bytes_accessed),
    )(x, scale, shift, w1, w2)

    return out[:N, :, :HW].reshape(N, Cout, H, W)


def ref_forward(x_nchw, bn_w, bn_b, bn_rm, bn_rv, w1, w2):
    """Pure-JAX reference (eval-mode BN, 1x1 convs) for correctness checking."""
    eps = 1e-5
    scale = bn_w / jnp.sqrt(bn_rv + eps)
    shift = bn_b - bn_rm * scale
    out = x_nchw * scale[None, :, None, None] + shift[None, :, None, None]
    out = jnp.maximum(out, 0.0)
    out = jnp.einsum('oi,nihw->nohw', w1[:, :, 0, 0], out)
    out = jnp.maximum(out, 0.0)
    out = jnp.einsum('oi,nihw->nohw', w2[:, :, 0, 0], out)
    return out + x_nchw


if __name__ == "__main__":
    # Small shapes consistent with the module: N=2, inplanes=planes=8,
    # H=W=16, stride=1, downsample=None.
    N, C, H, W = 2, 8, 16, 16
    key = jax.random.PRNGKey(0)
    kx, kw1, kw2, kbw, kbb, krm, krv = jax.random.split(key, 7)

    x = jax.random.normal(kx, (N, C, H, W), dtype=jnp.float32)

    # Deterministic synthetic parameters (shapes per module __init__;
    # conv1x1 -> kernel size 1).
    w1 = 0.1 * jax.random.normal(kw1, (C, C, 1, 1), dtype=jnp.float32)
    w2 = 0.1 * jax.random.normal(kw2, (C, C, 1, 1), dtype=jnp.float32)
    bn_w = 1.0 + 0.1 * jax.random.normal(kbw, (C,), dtype=jnp.float32)
    bn_b = 0.1 * jax.random.normal(kbb, (C,), dtype=jnp.float32)
    bn_rm = 0.1 * jax.random.normal(krm, (C,), dtype=jnp.float32)
    bn_rv = 1.0 + 0.1 * jax.random.uniform(krv, (C,), dtype=jnp.float32)

    out = my_basic_res_block_ks1(x, bn_w, bn_b, bn_rm, bn_rv, w1, w2)
    out = jax.block_until_ready(out)

    ref = ref_forward(x, bn_w, bn_b, bn_rm, bn_rv, w1, w2)
    assert out.shape == (N, C, H, W)
    assert jnp.allclose(out, ref, rtol=1e-4, atol=1e-4), (
        float(jnp.max(jnp.abs(out - ref))))

    print("KERNEL_OK")
</pallas_src>

<mosaic_0001>
module attributes {stable_mosaic.version = 11 : i64} {
  func.func @resblock_ks1_kernel(%arg0: i32, %arg1: memref<1x8x256xf32, #tpu.memory_space<vmem>>, %arg2: memref<8x1xf32, #tpu.memory_space<vmem>>, %arg3: memref<8x1xf32, #tpu.memory_space<vmem>>, %arg4: memref<8x8xf32, #tpu.memory_space<vmem>>, %arg5: memref<8x8xf32, #tpu.memory_space<vmem>>, %arg6: memref<1x8x256xf32, #tpu.memory_space<vmem>>) attributes {dimension_semantics = [#tpu.dimension_semantics<parallel>], iteration_bounds = array<i64: 2>, scalar_prefetch = 0 : i64, scratch_operands = 0 : i64, tpu.core_type = #tpu.core_type<tc>, window_params = [{transform_indices = @transform_0, window_bounds = array<i64: 1, 8, 256>}, {pipeline_mode = #tpu.pipeline_mode<synchronous>, transform_indices = @transform_1, window_bounds = array<i64: 8, 1>}, {pipeline_mode = #tpu.pipeline_mode<synchronous>, transform_indices = @transform_2, window_bounds = array<i64: 8, 1>}, {pipeline_mode = #tpu.pipeline_mode<synchronous>, transform_indices = @transform_3, window_bounds = array<i64: 8, 8>}, {pipeline_mode = #tpu.pipeline_mode<synchronous>, transform_indices = @transform_4, window_bounds = array<i64: 8, 8>}, {transform_indices = @transform_5, window_bounds = array<i64: 1, 8, 256>}]} {
    %c0 = arith.constant 0 : index
    %c0_0 = arith.constant 0 : index
    %0 = vector.load %arg2[%c0, %c0_0] : memref<8x1xf32, #tpu.memory_space<vmem>>, vector<8x1xf32>
    %c0_1 = arith.constant 0 : index
    %c0_2 = arith.constant 0 : index
    %1 = vector.load %arg3[%c0_1, %c0_2] : memref<8x1xf32, #tpu.memory_space<vmem>>, vector<8x1xf32>
    %c0_3 = arith.constant 0 : index
    %c0_4 = arith.constant 0 : index
    %2 = vector.load %arg4[%c0_3, %c0_4] : memref<8x8xf32, #tpu.memory_space<vmem>>, vector<8x8xf32>
    %c0_5 = arith.constant 0 : index
    %c0_6 = arith.constant 0 : index
    %3 = vector.load %arg5[%c0_5, %c0_6] : memref<8x8xf32, #tpu.memory_space<vmem>>, vector<8x8xf32>
    %c0_i32 = arith.constant 0 : i32
    %4 = arith.index_cast %c0_i32 : i32 to index
    %c0_7 = arith.constant 0 : index
    %c0_8 = arith.constant 0 : index
    %5 = vector.load %arg1[%4, %c0_7, %c0_8] : memref<1x8x256xf32, #tpu.memory_space<vmem>>, vector<1x8x256xf32>
    %6 = vector.shape_cast %5 : vector<1x8x256xf32> to vector<8x256xf32>
    %7 = vector.broadcast %0 : vector<8x1xf32> to vector<8x256xf32>
    %8 = arith.mulf %6, %7 : vector<8x256xf32>
    %9 = vector.broadcast %1 : vector<8x1xf32> to vector<8x256xf32>
    %10 = arith.addf %8, %9 : vector<8x256xf32>
    %cst = arith.constant 0.000000e+00 : f32
    %11 = vector.broadcast %cst : f32 to vector<8x256xf32>
    %12 = arith.maximumf %10, %11 : vector<8x256xf32>
    %cst_9 = arith.constant dense<0.000000e+00> : vector<8x256xf32>
    %13 = tpu.matmul %2, %12, %cst_9 {dimension_numbers = #tpu.dot_dimension_numbers<[1], [0], [0], [1], [0, 0, 1, 1], [], []>} : vector<8x8xf32>, vector<8x256xf32>, vector<8x256xf32> -> vector<8x256xf32>
    %cst_10 = arith.constant 0.000000e+00 : f32
    %14 = vector.broadcast %cst_10 : f32 to vector<8x256xf32>
    %15 = arith.maximumf %13, %14 : vector<8x256xf32>
    %cst_11 = arith.constant dense<0.000000e+00> : vector<8x256xf32>
    %16 = tpu.matmul %3, %15, %cst_11 {dimension_numbers = #tpu.dot_dimension_numbers<[1], [0], [0], [1], [0, 0, 1, 1], [], []>} : vector<8x8xf32>, vector<8x256xf32>, vector<8x256xf32> -> vector<8x256xf32>
    %17 = arith.addf %16, %6 : vector<8x256xf32>
    %18 = arith.index_cast %c0_i32 : i32 to index
    %c0_12 = arith.constant 0 : index
    %c0_13 = arith.constant 0 : index
    %19 = vector.load %arg6[%18, %c0_12, %c0_13] : memref<1x8x256xf32, #tpu.memory_space<vmem>>, vector<1x8x256xf32>
    %20 = vector.shape_cast %19 : vector<1x8x256xf32> to vector<8x256xf32>
    %21 = vector.shape_cast %17 : vector<8x256xf32> to vector<1x8x256xf32>
    tpu.vector_store %arg6[%18, %c0_12, %c0_13], %21 {strides = array<i32>} : memref<1x8x256xf32, #tpu.memory_space<vmem>>, vector<1x8x256xf32>,
    %c1_i32 = arith.constant 1 : i32
    return
  }
  func.func @transform_0(%arg0: i32) -> (i32, i32, i32) {
    %c0_i32 = arith.constant 0 : i32
    %c0_i32_0 = arith.constant 0 : i32
    %c0_i32_1 = arith.constant 0 : i32
    return %arg0, %c0_i32, %c0_i32_0 : i32, i32, i32
  }
  func.func @transform_1(%arg0: i32) -> (i32, i32) {
    %c0_i32 = arith.constant 0 : i32
    %c0_i32_0 = arith.constant 0 : i32
    %c0_i32_1 = arith.constant 0 : i32
    return %c0_i32, %c0_i32_0 : i32, i32
  }
  func.func @transform_2(%arg0: i32) -> (i32, i32) {
    %c0_i32 = arith.constant 0 : i32
    %c0_i32_0 = arith.constant 0 : i32
    %c0_i32_1 = arith.constant 0 : i32
    return %c0_i32, %c0_i32_0 : i32, i32
  }
  func.func @transform_3(%arg0: i32) -> (i32, i32) {
    %c0_i32 = arith.constant 0 : i32
    %c0_i32_0 = arith.constant 0 : i32
    %c0_i32_1 = arith.constant 0 : i32
    return %c0_i32, %c0_i32_0 : i32, i32
  }
  func.func @transform_4(%arg0: i32) -> (i32, i32) {
    %c0_i32 = arith.constant 0 : i32
    %c0_i32_0 = arith.constant 0 : i32
    %c0_i32_1 = arith.constant 0 : i32
    return %c0_i32, %c0_i32_0 : i32, i32
  }
  func.func @transform_5(%arg0: i32) -> (i32, i32, i32) {
    %c0_i32 = arith.constant 0 : i32
    %c0_i32_0 = arith.constant 0 : i32
    %c0_i32_1 = arith.constant 0 : i32
    return %arg0, %c0_i32, %c0_i32_0 : i32, i32, i32
  }
}

</mosaic_0001>

<llo_original>
// kernel: my_basic_res_block_ks1.1
$region0: #{my_basic_res_block_ks1.1}
  #allocation0 [shape = 'u32[]', space=smem, size = 0x4, offset = 0x4, fixed_abs, tag = 'smem constant byte address 0x4 - core index']
  #allocation1 [shape = 'u32[144,128]{1,0:T(1,128)}', space=vmem, size = 0x12000, scoped, tag = 'internal scratch']
  %s0 = inlined_call_operand.vmem [shape: f32[2,8,256], index: 0, kind: input, shape index: {}, may-alias: {0,5}]
  %s1 = inlined_call_operand.vmem [shape: f32[8,1], index: 1, kind: input, shape index: {}]
  %s2 = inlined_call_operand.vmem [shape: f32[8,1], index: 2, kind: input, shape index: {}]
  %s3 = inlined_call_operand.vmem [shape: f32[8,8], index: 3, kind: input, shape index: {}]
  %s4 = inlined_call_operand.vmem [shape: f32[8,8], index: 4, kind: input, shape index: {}]
  %s5 = inlined_call_operand.vmem [shape: f32[2,8,256], index: 5, kind: output, shape index: {}, may-alias: {0,5}]
  %s6 = sld [smem:[#allocation0]]
  $region53: #{my_basic_res_block_ks1.1} parent=0
    _
  %s8 = ssub.s32 1, %s6
  %s9 = scalar_select 0, %s8, %s6
  loop: start=0, step=1, limit=4
  $region2: #{my_basic_res_block_ks1.1} parent=0 // loop_pre_header
    _
  $region3: #{my_basic_res_block_ks1.1} parent=0 // loop_header
    %s11 = sphi 0, %s15
    %p12 = scmp.ge.s32.totalorder %s11, 4
    %s21 = sphi 0, %s23
    %s24 = sphi 0, %s21
    %s25 = sphi 0, %s24
    %s41 = sphi 0, %s25
    %s45 = sphi 0, %s45
    %s47 = sphi 0, %s45
    %s48 = sphi 0, %s47
    %s62 = sphi 0, %s48
    %s66 = sphi 0, %s66
    %s68 = sphi 0, %s66
    %s69 = sphi 0, %s68
    %s83 = sphi 0, %s69
    %s87 = sphi 0, %s87
    %s89 = sphi 0, %s87
    %s90 = sphi 0, %s89
    %s104 = sphi 0, %s90
    %s108 = sphi 0, %s108
    %s110 = sphi 0, %s108
    %s111 = sphi 0, %s110
    %s125 = sphi 0, %s111
    %s131 = sphi 0, %s133
    %s134 = sphi 0, %s131
    %s135 = sphi 0, %s134
    %s151 = sphi 0, %s135
  $region4: #{my_basic_res_block_ks1.1} parent=0 // loop_header_branch
    %14 = sbr.rel (%p12) target = $region8
  $region5: #{my_basic_res_block_ks1.1} parent=0 // loop_body
    %s16 = ssub.s32 %s11, 1
    %s17 = ssub.s32 %s11, 2
    %s18 = sadd.s32 %s11, 1
    %s19 = ssub.s32 %s11, %s18
    %p20 = scmp.eq.s32.totalorder %s19, 0
    %s22 = sadd.s32 %s21, 1
    %s23 = scalar_select %p20, %s21, %s22
    %p26 = pneg %p20
    %p27 = scmp.eq.s32.totalorder %s11, 1
    %p28 = por %p26, %p27
    %p29 = scmp.ne.s32.totalorder %s21, %s24
    %p30 = scmp.eq.s32.totalorder %s11, 0
    %p31 = por %p29, %p30
    %p32 = scmp.ne.s32.totalorder %s21, %s24
    %p33 = scmp.eq.s32.totalorder %s16, 1
    %p34 = por %p32, %p33
    %p35 = scmp.ne.s32.totalorder %s24, %s25
    %p36 = scmp.eq.s32.totalorder %s16, 0
    %p37 = por %p35, %p36
    %p38 = scmp.ne.s32.totalorder %s24, %s25
    %p39 = scmp.eq.s32.totalorder %s17, 1
    %p40 = por %p38, %p39
    %p42 = scmp.ne.s32.totalorder %s25, %s41
    %p43 = scmp.eq.s32.totalorder %s17, 0
    %p44 = por %p42, %p43
    %s46 = sadd.s32 %s45, 1
    %p49 = scmp.eq.s32.totalorder %s11, 1
    %p50 = scmp.ne.s32.totalorder %s45, %s47
    %p51 = scmp.eq.s32.totalorder %s11, 0
    %p52 = por %p50, %p51
    %p53 = scmp.ne.s32.totalorder %s45, %s47
    %p54 = scmp.eq.s32.totalorder %s16, 1
    %p55 = por %p53, %p54
    %p56 = scmp.ne.s32.totalorder %s47, %s48
    %p57 = scmp.eq.s32.totalorder %s16, 0
    %p58 = por %p56, %p57
    %p59 = scmp.ne.s32.totalorder %s47, %s48
    %p60 = scmp.eq.s32.totalorder %s17, 1
    %p61 = por %p59, %p60
    %p63 = scmp.ne.s32.totalorder %s48, %s62
    %p64 = scmp.eq.s32.totalorder %s17, 0
    %p65 = por %p63, %p64
    %s67 = sadd.s32 %s66, 1
    %p70 = scmp.eq.s32.totalorder %s11, 1
    %p71 = scmp.ne.s32.totalorder %s66, %s68
    %p72 = scmp.eq.s32.totalorder %s11, 0
    %p73 = por %p71, %p72
    %p74 = scmp.ne.s32.totalorder %s66, %s68
    %p75 = scmp.eq.s32.totalorder %s16, 1
    %p76 = por %p74, %p75
    %p77 = scmp.ne.s32.totalorder %s68, %s69
    %p78 = scmp.eq.s32.totalorder %s16, 0
    %p79 = por %p77, %p78
    %p80 = scmp.ne.s32.totalorder %s68, %s69
    %p81 = scmp.eq.s32.totalorder %s17, 1
    %p82 = por %p80, %p81
    %p84 = scmp.ne.s32.totalorder %s69, %s83
    %p85 = scmp.eq.s32.totalorder %s17, 0
    %p86 = por %p84, %p85
    %s88 = sadd.s32 %s87, 1
    %p91 = scmp.eq.s32.totalorder %s11, 1
    %p92 = scmp.ne.s32.totalorder %s87, %s89
    %p93 = scmp.eq.s32.totalorder %s11, 0
    %p94 = por %p92, %p93
    %p95 = scmp.ne.s32.totalorder %s87, %s89
    %p96 = scmp.eq.s32.totalorder %s16, 1
    %p97 = por %p95, %p96
    %p98 = scmp.ne.s32.totalorder %s89, %s90
    %p99 = scmp.eq.s32.totalorder %s16, 0
    %p100 = por %p98, %p99
    %p101 = scmp.ne.s32.totalorder %s89, %s90
    %p102 = scmp.eq.s32.totalorder %s17, 1
    %p103 = por %p101, %p102
    %p105 = scmp.ne.s32.totalorder %s90, %s104
    %p106 = scmp.eq.s32.totalorder %s17, 0
    %p107 = por %p105, %p106
    %s109 = sadd.s32 %s108, 1
    %p112 = scmp.eq.s32.totalorder %s11, 1
    %p113 = scmp.ne.s32.totalorder %s108, %s110
    %p114 = scmp.eq.s32.totalorder %s11, 0
    %p115 = por %p113, %p114
    %p116 = scmp.ne.s32.totalorder %s108, %s110
    %p117 = scmp.eq.s32.totalorder %s16, 1
    %p118 = por %p116, %p117
    %p119 = scmp.ne.s32.totalorder %s110, %s111
    %p120 = scmp.eq.s32.totalorder %s16, 0
    %p121 = por %p119, %p120
    %p122 = scmp.ne.s32.totalorder %s110, %s111
    %p123 = scmp.eq.s32.totalorder %s17, 1
    %p124 = por %p122, %p123
    %p126 = scmp.ne.s32.totalorder %s111, %s125
    %p127 = scmp.eq.s32.totalorder %s17, 0
    %p128 = por %p126, %p127
    %s129 = ssub.s32 %s11, %s18
    %p130 = scmp.eq.s32.totalorder %s129, 0
    %s132 = sadd.s32 %s131, 1
    %s133 = scalar_select %p130, %s131, %s132
    %p136 = pneg %p130
    %p137 = scmp.eq.s32.totalorder %s11, 1
    %p138 = por %p136, %p137
    %p139 = scmp.ne.s32.totalorder %s131, %s134
    %p140 = scmp.eq.s32.totalorder %s11, 0
    %p141 = por %p139, %p140
    %p142 = scmp.ne.s32.totalorder %s131, %s134
    %p143 = scmp.eq.s32.totalorder %s16, 1
    %p144 = por %p142, %p143
    %p145 = scmp.ne.s32.totalorder %s134, %s135
    %p146 = scmp.eq.s32.totalorder %s16, 0
    %p147 = por %p145, %p146
    %p148 = scmp.ne.s32.totalorder %s134, %s135
    %p149 = scmp.eq.s32.totalorder %s17, 1
    %p150 = por %p148, %p149
    %p152 = scmp.ne.s32.totalorder %s135, %s151
    %p153 = scmp.eq.s32.totalorder %s17, 0
    %p154 = por %p152, %p153
    %p155 = scmp.le.s32.totalorder 1, %s11
    %p156 = scmp.lt.s32.totalorder %s11, 3
    %p157 = pnand %p155, %p156
    %p158 = pneg %p157
    // Predicated region
    $region9: #{my_basic_res_block_ks1.1} parent=5 // pred_check
      _
    $region10: #{my_basic_res_block_ks1.1} parent=5 // pred_check_branch
      %160 = sbr.rel (%p157) target = $region12
    $region11: #{my_basic_res_block_ks1.1} parent=5 // pred_region
      %s161 = ssub.s32 %s11, 1
      // Predicated region
      $region13: #{my_basic_res_block_ks1.1} parent=11 // pred_check
        %p162 = pneg %p58
      $region14: #{my_basic_res_block_ks1.1} parent=11 // pred_check_branch
        %164 = sbr.rel (%p162) target = $region16
      $region15: #{my_basic_res_block_ks1.1} parent=11 // pred_region
        _
      $region16: #{my_basic_res_block_ks1.1} parent=11 // pred_fallthru
        _
      // Predicated region
      $region17: #{my_basic_res_block_ks1.1} parent=11 // pred_check
        %p165 = pneg %p79
      $region18: #{my_basic_res_block_ks1.1} parent=11 // pred_check_branch
        %167 = sbr.rel (%p165) target = $region20
      $region19: #{my_basic_res_block_ks1.1} parent=11 // pred_region
        _
      $region20: #{my_basic_res_block_ks1.1} parent=11 // pred_fallthru
        _
      // Predicated region
      $region21: #{my_basic_res_block_ks1.1} parent=11 // pred_check
        %p168 = pneg %p100
      $region22: #{my_basic_res_block_ks1.1} parent=11 // pred_check_branch
        %170 = sbr.rel (%p168) target = $region24
      $region23: #{my_basic_res_block_ks1.1} parent=11 // pred_region
        _
      $region24: #{my_basic_res_block_ks1.1} parent=11 // pred_fallthru
        _
      // Predicated region
      $region25: #{my_basic_res_block_ks1.1} parent=11 // pred_check
        %p171 = pneg %p121
      $region26: #{my_basic_res_block_ks1.1} parent=11 // pred_check_branch
        %173 = sbr.rel (%p171) target = $region28
      $region27: #{my_basic_res_block_ks1.1} parent=11 // pred_region
        _
      $region28: #{my_basic_res_block_ks1.1} parent=11 // pred_fallthru
        _
    $region12: #{my_basic_res_block_ks1.1} parent=5 // pred_fallthru
      _
    %p174 = scmp.lt.s32.totalorder %s11, 2
    // Predicated region
    $region29: #{my_basic_res_block_ks1.1} parent=5 // pred_check
      %p175 = pneg %p174
    $region30: #{my_basic_res_block_ks1.1} parent=5 // pred_check_branch
      %177 = sbr.rel (%p175) target = $region32
    $region31: #{my_basic_res_block_ks1.1} parent=5 // pred_region
      // Predicated region
      $region33: #{my_basic_res_block_ks1.1} parent=31 // pred_check
        %p178 = pneg %p31
      $region34: #{my_basic_res_block_ks1.1} parent=31 // pred_check_branch
        %180 = sbr.rel (%p178) target = $region36
      $region35: #{my_basic_res_block_ks1.1} parent=31 // pred_region
        %p181 = scmp.lt.s32.totalorder %s11, 1
        %s182 = scalar_select %p181, %s11, 1
        %s183 = smul.addr %s182, 2
        %s184 = smul.addr %s183, 8
        %s185 = scalar_lea.vmem %s0, %s184
      $region36: #{my_basic_res_block_ks1.1} parent=31 // pred_fallthru
        _
    $region32: #{my_basic_res_block_ks1.1} parent=5 // pred_fallthru
      _
    %p186 = scmp.le.s32.totalorder 1, %s11
    %p187 = scmp.lt.s32.totalorder %s11, 3
    %p188 = pnand %p186, %p187
    %p189 = pneg %p188
    // Predicated region
    $region37: #{my_basic_res_block_ks1.1} parent=5 // pred_check
      _
    $region38: #{my_basic_res_block_ks1.1} parent=5 // pred_check_branch
      %191 = sbr.rel (%p188) target = $region40
    $region39: #{my_basic_res_block_ks1.1} parent=5 // pred_region
      %s192 = ssub.s32 %s11, 1
      %p193 = scmp.lt.s32.totalorder %s16, 1
      %s194 = scalar_select %p193, %s16, 1
      %s195 = smul.addr %s194, 2
      %s196 = smul.addr %s195, 8
      %s197 = scalar_lea.vmem %s0, %s196
      %p198 = pneg %p37
      %p199 = pneg %p34
      %p200 = pneg %p58
      %p201 = pneg %p55
      %p202 = pneg %p79
      %p203 = pneg %p76
      %p204 = pneg %p100
      %p205 = pneg %p97
      %p206 = pneg %p121
      %p207 = pneg %p118
      %p208 = pneg %p147
      %p209 = pneg %p144
      %p210 = scmp.lt.s32.totalorder %s16, 1
      %s211 = scalar_select %p210, %s16, 1
      %s212 = smul.addr %s211, 2
      %s213 = smul.addr %s212, 8
      %s214 = scalar_lea.vmem %s5, %s213
      %p215 = scmp.lt.s32.totalorder %s16, 1
      %s216 = scalar_select %p215, %s16, 1
      %s217 = smul.addr %s216, 2
      %s218 = smul.addr %s217, 8
      %s219 = scalar_lea.vmem %s0, %s218
      %p220 = scmp.lt.s32.totalorder %s16, 1
      %s221 = scalar_select %p220, %s16, 1
      %s222 = smul.addr %s221, 2
      %s223 = smul.addr %s222, 8
      %s224 = scalar_lea.vmem %s5, %s223
      %v225 = vld [vmem:[%s1] sm:$0xff]
      %v226 = vld [vmem:[%s2] sm:$0xff]
      %v227 = vld [vmem:[%s3] sm:$0xff]
      %v228 = vld [vmem:[%s4] sm:$0xff]
      %v229 = vld [vmem:[%s219] sm:$0xff]
      %v230 = vld [vmem:[%s219 + $0x8] sm:$0xff]
      %232 = vset.pattern.permute.xlu0 0
      %233 = vperm.xlu0 %232, %v225
      %v234 = vpop.permute.xlu0 %233
      %v236 = vmul.f32 %v229, %v234
      %v237 = vmul.f32 %v230, %v234
      %239 = vset.pattern.permute.xlu0 0
      %240 = vperm.xlu0 %239, %v226
      %v241 = vpop.permute.xlu0 %240
      %v243 = vadd.f32 %v236, %v241
      %v244 = vadd.f32 %v237, %v241
      %v245 = vmax.f32 %v243, 0.0
      %v246 = vmax.f32 %v244, 0.0
      %vm247 = vcmask 64512
      %v249 = vsel %vm247, %v227, 0
      %251 = vmatprep.subr.mxu0 0.0
      %252 = vmatpush1.msra.mxu0 0.0
      %253 = vmatprep.subr.mxu0 0.0
      %254 = vmatpush1.msra.mxu0 0.0
      %255 = vmatprep.subr.mxu0 0.0
      %256 = vmatpush1.msra.mxu0 0.0
      %257 = vmatprep.subr.mxu0 0.0
      %258 = vmatpush1.msra.mxu0 0.0
      %259 = vmatprep.subr.mxu0 0.0
      %260 = vmatpush1.msra.mxu0 0.0
      %261 = vmatprep.subr.mxu0 0.0
      %262 = vmatpush1.msra.mxu0 0.0
      %263 = vmatprep.subr.mxu0 0.0
      %264 = vmatpush1.msra.mxu0 0.0
      %265 = vmatprep.subr.mxu0 0.0
      %266 = vmatpush1.msra.mxu0 0.0
      %267 = vmatprep.subr.mxu0 0.0
      %268 = vmatpush1.msra.mxu0 0.0
      %269 = vmatprep.subr.mxu0 0.0
      %270 = vmatpush1.msra.mxu0 0.0
      %271 = vmatprep.subr.mxu0 0.0
      %272 = vmatpush1.msra.mxu0 0.0
      %273 = vmatprep.subr.mxu0 0.0
      %274 = vmatpush1.msra.mxu0 0.0
      %275 = vmatprep.subr.mxu0 0.0
      %276 = vmatpush1.msra.mxu0 0.0
      %277 = vmatprep.subr.mxu0 0.0
      %278 = vmatpush1.msra.mxu0 0.0
      %279 = vmatprep.subr.mxu0 0.0
      %280 = vmatpush1.msra.mxu0 0.0
      %281 = vmatprep.subr.mxu0 %v246
      %282 = vmatpush1.msra.mxu0 %v245
      %283 = vmatprep.subr.mxu0 0.0
      %284 = vmatpush2.msra.mxu0 0.0
      %285 = vmatprep.subr.mxu0 0.0
      %286 = vmatpush2.msra.mxu0 0.0
      %287 = vmatprep.subr.mxu0 0.0
      %288 = vmatpush2.msra.mxu0 0.0
      %289 = vmatprep.subr.mxu0 0.0
      %290 = vmatpush2.msra.mxu0 0.0
      %291 = vmatprep.subr.mxu0 0.0
      %292 = vmatpush2.msra.mxu0 0.0
      %293 = vmatprep.subr.mxu0 0.0
      %294 = vmatpush2.msra.mxu0 0.0
      %295 = vmatprep.subr.mxu0 0.0
      %296 = vmatpush2.msra.mxu0 0.0
      %297 = vmatprep.subr.mxu0 0.0
      %298 = vmatpush2.msra.mxu0 0.0
      %299 = vmatprep.subr.mxu0 0.0
      %300 = vmatpush2.msra.mxu0 0.0
      %301 = vmatprep.subr.mxu0 0.0
      %302 = vmatpush2.msra.mxu0 0.0
      %303 = vmatprep.subr.mxu0 0.0
      %304 = vmatpush2.msra.mxu0 0.0
      %305 = vmatprep.subr.mxu0 0.0
      %306 = vmatpush2.msra.mxu0 0.0
      %307 = vmatprep.subr.mxu0 0.0
      %308 = vmatpush2.msra.mxu0 0.0
      %309 = vmatprep.subr.mxu0 0.0
      %310 = vmatpush2.msra.mxu0 0.0
      %311 = vmatprep.subr.mxu0 0.0
      %312 = vmatpush2.msra.mxu0 0.0
      %313 = vmatprep.subr.mxu0 0.0
      %314 = vmatpush2.msra.mxu0 0.0
      %315 = vmatprep.mubr.f32.mxu0 0.0
      %316 = vmatmul.mubr.f32.gmra.mxu0 %v249
      %v317 = vpop.f32.mrf.mxu0
      %v318 = vadd.f32 0.0, %v317
      %v319 = vpop.f32.mrf.mxu0
      %v320 = vadd.f32 0.0, %v319
      %321 = vdwg.mxu0
      %v322 = vmax.f32 %v318, 0.0
      %v323 = vmax.f32 %v320, 0.0
      %v325 = vsel %vm247, %v228, 0
      %327 = vmatprep.subr.mxu0 0.0
      %328 = vmatpush1.msra.mxu0 0.0
      %329 = vmatprep.subr.mxu0 0.0
      %330 = vmatpush1.msra.mxu0 0.0
      %331 = vmatprep.subr.mxu0 0.0
      %332 = vmatpush1.msra.mxu0 0.0
      %333 = vmatprep.subr.mxu0 0.0
      %334 = vmatpush1.msra.mxu0 0.0
      %335 = vmatprep.subr.mxu0 0.0
      %336 = vmatpush1.msra.mxu0 0.0
      %337 = vmatprep.subr.mxu0 0.0
      %338 = vmatpush1.msra.mxu0 0.0
      %339 = vmatprep.subr.mxu0 0.0
      %340 = vmatpush1.msra.mxu0 0.0
      %341 = vmatprep.subr.mxu0 0.0
      %342 = vmatpush1.msra.mxu0 0.0
      %343 = vmatprep.subr.mxu0 0.0
      %344 = vmatpush1.msra.mxu0 0.0
      %345 = vmatprep.subr.mxu0 0.0
      %346 = vmatpush1.msra.mxu0 0.0
      %347 = vmatprep.subr.mxu0 0.0
      %348 = vmatpush1.msra.mxu0 0.0
      %349 = vmatprep.subr.mxu0 0.0
      %350 = vmatpush1.msra.mxu0 0.0
      %351 = vmatprep.subr.mxu0 0.0
      %352 = vmatpush1.msra.mxu0 0.0
      %353 = vmatprep.subr.mxu0 0.0
      %354 = vmatpush1.msra.mxu0 0.0
      %355 = vmatprep.subr.mxu0 0.0
      %356 = vmatpush1.msra.mxu0 0.0
      %357 = vmatprep.subr.mxu0 %v323
      %358 = vmatpush1.msra.mxu0 %v322
      %359 = vmatprep.subr.mxu0 0.0
      %360 = vmatpush2.msra.mxu0 0.0
      %361 = vmatprep.subr.mxu0 0.0
      %362 = vmatpush2.msra.mxu0 0.0
      %363 = vmatprep.subr.mxu0 0.0
      %364 = vmatpush2.msra.mxu0 0.0
      %365 = vmatprep.subr.mxu0 0.0
      %366 = vmatpush2.msra.mxu0 0.0
      %367 = vmatprep.subr.mxu0 0.0
      %368 = vmatpush2.msra.mxu0 0.0
      %369 = vmatprep.subr.mxu0 0.0
      %370 = vmatpush2.msra.mxu0 0.0
      %371 = vmatprep.subr.mxu0 0.0
      %372 = vmatpush2.msra.mxu0 0.0
      %373 = vmatprep.subr.mxu0 0.0
      %374 = vmatpush2.msra.mxu0 0.0
      %375 = vmatprep.subr.mxu0 0.0
      %376 = vmatpush2.msra.mxu0 0.0
      %377 = vmatprep.subr.mxu0 0.0
      %378 = vmatpush2.msra.mxu0 0.0
      %379 = vmatprep.subr.mxu0 0.0
      %380 = vmatpush2.msra.mxu0 0.0
      %381 = vmatprep.subr.mxu0 0.0
      %382 = vmatpush2.msra.mxu0 0.0
      %383 = vmatprep.subr.mxu0 0.0
      %384 = vmatpush2.msra.mxu0 0.0
      %385 = vmatprep.subr.mxu0 0.0
      %386 = vmatpush2.msra.mxu0 0.0
      %387 = vmatprep.subr.mxu0 0.0
      %388 = vmatpush2.msra.mxu0 0.0
      %389 = vmatprep.subr.mxu0 0.0
      %390 = vmatpush2.msra.mxu0 0.0
      %391 = vmatprep.mubr.f32.mxu0 0.0
      %392 = vmatmul.mubr.f32.gmra.mxu0 %v325
      %v393 = vpop.f32.mrf.mxu0
      %v394 = vadd.f32 %v229, %v393
      %v395 = vpop.f32.mrf.mxu0
      %v396 = vadd.f32 %v230, %v395
      %397 = vdwg.mxu0
      %398 = vst [vmem:[%s224] sm:$0xff] %v394
      %399 = vst [vmem:[%s224 + $0x8] sm:$0xff] %v396
      %p400 = scmp.lt.s32.totalorder %s16, 1
      %s401 = scalar_select %p400, %s16, 1
      %s402 = smul.addr %s401, 2
      %s403 = smul.addr %s402, 8
      %s404 = scalar_lea.vmem %s5, %s403
      // Predicated region
      $region41: #{my_basic_res_block_ks1.1} parent=39 // pred_check
        %p405 = pneg %p144
      $region42: #{my_basic_res_block_ks1.1} parent=39 // pred_check_branch
        %407 = sbr.rel (%p405) target = $region44
      $region43: #{my_basic_res_block_ks1.1} parent=39 // pred_region
        _
      $region44: #{my_basic_res_block_ks1.1} parent=39 // pred_fallthru
        _
    $region40: #{my_basic_res_block_ks1.1} parent=5 // pred_fallthru
      _
    %p408 = scmp.le.s32.totalorder 2, %s11
    // Predicated region
    $region45: #{my_basic_res_block_ks1.1} parent=5 // pred_check
      %p409 = pneg %p408
    $region46: #{my_basic_res_block_ks1.1} parent=5 // pred_check_branch
      %411 = sbr.rel (%p409) target = $region48
    $region47: #{my_basic_res_block_ks1.1} parent=5 // pred_region
      %s412 = ssub.s32 %s11, 2
      // Predicated region
      $region49: #{my_basic_res_block_ks1.1} parent=47 // pred_check
        %p413 = pneg %p150
      $region50: #{my_basic_res_block_ks1.1} parent=47 // pred_check_branch
        %415 = sbr.rel (%p413) target = $region52
      $region51: #{my_basic_res_block_ks1.1} parent=47 // pred_region
        %p416 = scmp.lt.s32.totalorder %s17, 1
        %s417 = scalar_select %p416, %s17, 1
        %s418 = smul.addr %s417, 2
        %s419 = smul.addr %s418, 8
        %s420 = scalar_lea.vmem %s5, %s419
      $region52: #{my_basic_res_block_ks1.1} parent=47 // pred_fallthru
        _
    $region48: #{my_basic_res_block_ks1.1} parent=5 // pred_fallthru
      _
  $region6: #{my_basic_res_block_ks1.1} parent=0 // loop_footer
    %s15 = sadd.s32 1, %s11
  $region7: #{my_basic_res_block_ks1.1} parent=0 // loop_footer_branch
    %10 = sbr.rel target = $region3
  $region8: #{my_basic_res_block_ks1.1} parent=0 // loop_exit
    _

</llo_original>
